<compile_context>
chip_gen: v7x
topology: tpu7x:2x2x1
jax: 0.10.0
libtpu: 0.0.40
codegen_flags: <defaults>
</compile_context>

<pallas_src>
import functools
import time

import jax
import jax.numpy as jnp
from jax.experimental import pallas as pl
from jax.experimental.pallas import tpu as pltpu


# ---------------------------------------------------------------------------
# Kernel: (M, N, K)-tiled matmul with an f32 accumulator over the K axis.
# ---------------------------------------------------------------------------
def _matmul_kernel(x_ref, w_ref, o_ref, acc_ref):
    # Grid = (M tiles, N tiles, K tiles); K is the last ("arbitrary") axis.
    @pl.when(pl.program_id(2) == 0)
    def _init():
        acc_ref[...] = jnp.zeros_like(acc_ref)

    # Cast x to the weight's (possibly low-precision) dtype so bf16 weights
    # use the native MXU bf16 path; accumulation stays in float32.
    acc_ref[...] += jnp.dot(
        x_ref[...].astype(w_ref.dtype),
        w_ref[...],
        preferred_element_type=jnp.float32,
    )

    @pl.when(pl.program_id(2) == pl.num_programs(2) - 1)
    def _store():
        o_ref[...] = acc_ref[...].astype(o_ref.dtype)


# ---------------------------------------------------------------------------
# Tile-size selection.
# ---------------------------------------------------------------------------
def _pick_block(dim: int, max_block: int, aligns) -> int:
    """Largest divisor of `dim` that is <= max_block and a multiple of one of
    `aligns` (tried in order). Falls back to the full dim (always legal for
    BlockSpec since a full-extent block bypasses the (8,128) constraint)."""
    if dim <= max_block:
        return dim
    for a in aligns:
        b = (max_block // a) * a
        while b >= a:
            if dim % b == 0:
                return b
            b -= a
    # TODO(synk): pad awkward dims instead of falling back to a full block.
    return dim


# ---------------------------------------------------------------------------
# Pallas wrapper (jit'ed; tile sizes static).
# ---------------------------------------------------------------------------
@functools.partial(jax.jit, static_argnames=("tm", "tn", "tk"))
def _pallas_matmul(x, w, *, tm, tn, tk):
    M, K = x.shape
    _, N = w.shape
    grid = (M // tm, N // tn, K // tk)

    # VMEM budget: double-buffered x / w / out tiles + f32 accumulator,
    # with slack; capped well below v7x's 64 MiB physical VMEM.
    vmem_bytes = (
        2 * tm * tk * x.dtype.itemsize
        + 2 * tk * tn * w.dtype.itemsize
        + 2 * tm * tn * 4
        + tm * tn * 4
    )
    vmem_limit = min(int(vmem_bytes) * 2 + (2 << 20), 48 * 1024 * 1024)

    return pl.pallas_call(
        _matmul_kernel,
        out_shape=jax.ShapeDtypeStruct((M, N), jnp.float32),
        grid=grid,
        in_specs=[
            pl.BlockSpec((tm, tk), lambda i, j, k: (i, k)),
            pl.BlockSpec((tk, tn), lambda i, j, k: (k, j)),
        ],
        out_specs=pl.BlockSpec((tm, tn), lambda i, j, k: (i, j)),
        scratch_shapes=[pltpu.VMEM((tm, tn), jnp.float32)],
        compiler_params=pltpu.CompilerParams(
            dimension_semantics=("parallel", "parallel", "arbitrary"),
            vmem_limit_bytes=vmem_limit,
        ),
    )(x, w)


@jax.jit
def _xla_matmul(x, w):
    return jnp.dot(x.astype(w.dtype), w, preferred_element_type=jnp.float32)


_TINY_WEIGHT_BYTES = 1 << 20  # below ~1 MiB of weight traffic, XLA dot wins


def row_parallel_linear(x, w_fused, *, force_pallas: bool = False):
    """x: [M, H]; w_fused: [H, H] (= concat of per-shard W_i.T along K)."""
    M, K = x.shape
    Kw, N = w_fused.shape
    assert K == Kw

    weight_bytes = K * N * jnp.dtype(w_fused.dtype).itemsize
    if not force_pallas and weight_bytes < _TINY_WEIGHT_BYTES:
        # Pallas per-step + custom-call overhead dominates at this size.
        return _xla_matmul(x, w_fused)

    tm = _pick_block(M, 256, (8,))
    # >= 2 N tiles whenever N >= 512 (keeps both v7x TensorCores busy).
    tn = _pick_block(N, 512 if N >= 1024 else 256, (256, 128))
    tk = _pick_block(K, 512, (128,))
    return _pallas_matmul(x, w_fused, tm=tm, tn=tn, tk=tk)


# ---------------------------------------------------------------------------
# JAX/Pallas equivalent of MyModel (is_col_layer=False, row-parallel).
# ---------------------------------------------------------------------------
class MyModelJAX:
    def __init__(self, hidden_size: int = 256, tensor_split: int = 2, key=None,
                 weight_dtype=jnp.bfloat16, force_pallas: bool = False):
        assert hidden_size % tensor_split == 0
        self.hidden_size = hidden_size
        self.tensor_split = tensor_split
        self.force_pallas = force_pallas
        if key is None:
            key = jax.random.PRNGKey(0)
        keys = jax.random.split(key, tensor_split)
        k_in = hidden_size // tensor_split
        # nn.Linear default init: U(-1/sqrt(in_features), 1/sqrt(in_features)),
        # weight shape [out_features, in_features] = [hidden, hidden//split].
        bound = 1.0 / (k_in ** 0.5)
        self.shard_weights = [
            jax.random.uniform(
                keys[i], (hidden_size, k_in), dtype=jnp.float32,
                minval=-bound, maxval=bound,
            )
            for i in range(tensor_split)
        ]
        # Fuse ONCE:  sum_i x_i @ W_i.T == x @ concat_i(W_i.T, axis=0) -> [H, H]
        w_fused_f32 = jnp.concatenate([w.T for w in self.shard_weights], axis=0)
        # Store the streamed weight in `weight_dtype` (bf16 by default: the
        # kernel is weight-bandwidth bound at small batch; acc stays f32).
        self.w_fused = jax.block_until_ready(w_fused_f32.astype(weight_dtype))

    def forward(self, x):
        s1 = time.time()
        y = row_parallel_linear(x, self.w_fused, force_pallas=self.force_pallas)
        y = jax.block_until_ready(y)
        return y, time.time() - s1


if __name__ == "__main__":
    hidden_size = 256   # per-shard chunk stays lane-aligned (256 // 2 = 128)
    tensor_split = 2
    batch = 8

    root_key = jax.random.PRNGKey(0)
    k_x, k_w = jax.random.split(root_key)
    x = jax.random.normal(k_x, (batch, hidden_size), dtype=jnp.float32)

    # ---- exact-semantics f32-weight path, forced through the Pallas kernel ----
    model_f32 = MyModelJAX(hidden_size, tensor_split, key=k_w,
                           weight_dtype=jnp.float32, force_pallas=True)
    out, _ = model_f32.forward(x)          # includes compilation
    out, elapsed = model_f32.forward(x)    # steady state
    out = jax.block_until_ready(out)

    chunks = jnp.split(x, tensor_split, axis=-1)
    ref = sum(c @ w.T for c, w in zip(chunks, model_f32.shard_weights))
    assert out.shape == (batch, hidden_size)
    assert out.dtype == jnp.float32
    assert jnp.allclose(out, ref, atol=1e-4, rtol=1e-4)

    # ---- bandwidth-optimized bf16-weight path (module default) ----
    model_bf16 = MyModelJAX(hidden_size, tensor_split, key=k_w,
                            weight_dtype=jnp.bfloat16, force_pallas=True)
    out_bf16, _ = model_bf16.forward(x)
    out_bf16 = jax.block_until_ready(out_bf16)
    ref_bf16 = jnp.dot(x.astype(jnp.bfloat16), model_bf16.w_fused,
                       preferred_element_type=jnp.float32)
    assert jnp.allclose(out_bf16, ref_bf16, atol=1e-2, rtol=1e-2)

    # ---- exercise the multi-tile M/N/K accumulator path at a modest size ----
    hid2, batch2 = 1024, 16            # -> tn=512 (2 N tiles), tk=512 (2 K steps)
    x2 = jax.random.normal(jax.random.PRNGKey(1), (batch2, hid2), dtype=jnp.float32)
    model2 = MyModelJAX(hid2, tensor_split, key=jax.random.PRNGKey(2),
                        weight_dtype=jnp.float32, force_pallas=True)
    out2, _ = model2.forward(x2)
    out2 = jax.block_until_ready(out2)
    chunks2 = jnp.split(x2, tensor_split, axis=-1)
    ref2 = sum(c @ w.T for c, w in zip(chunks2, model2.shard_weights))
    assert jnp.allclose(out2, ref2, atol=5e-3, rtol=5e-3)

    print("KERNEL_OK")
</pallas_src>

<mosaic_0001>
module attributes {stable_mosaic.version = 11 : i64} {
  func.func @_matmul_kernel(%arg0: i32, %arg1: i32, %arg2: i32, %arg3: memref<8x256xf32, #tpu.memory_space<vmem>>, %arg4: memref<256x256xf32, #tpu.memory_space<vmem>>, %arg5: memref<8x256xf32, #tpu.memory_space<vmem>>, %arg6: memref<8x256xf32, #tpu.memory_space<vmem>>) attributes {dimension_semantics = [#tpu.dimension_semantics<parallel>, #tpu.dimension_semantics<parallel>, #tpu.dimension_semantics<arbitrary>], iteration_bounds = array<i64: 1, 1, 1>, scalar_prefetch = 0 : i64, scratch_operands = 1 : i64, tpu.core_type = #tpu.core_type<tc>, window_params = [{transform_indices = @transform_0, window_bounds = array<i64: 8, 256>}, {transform_indices = @transform_1, window_bounds = array<i64: 256, 256>}, {transform_indices = @transform_2, window_bounds = array<i64: 8, 256>}]} {
    %c0_i32 = arith.constant 0 : i32
    %0 = arith.cmpi eq, %arg2, %c0_i32 : i32
    %1 = arith.extui %0 : i1 to i32
    %c0_i32_0 = arith.constant 0 : i32
    %2 = arith.cmpi ne, %1, %c0_i32_0 : i32
    scf.if %2 {
      %cst_10 = arith.constant 0.000000e+00 : f32
      %12 = vector.broadcast %cst_10 : f32 to vector<8x256xf32>
      %c0_11 = arith.constant 0 : index
      %c0_12 = arith.constant 0 : index
      %13 = vector.load %arg6[%c0_11, %c0_12] : memref<8x256xf32, #tpu.memory_space<vmem>>, vector<8x256xf32>
      tpu.vector_store %arg6[%c0_11, %c0_12], %12 {strides = array<i32>} : memref<8x256xf32, #tpu.memory_space<vmem>>, vector<8x256xf32>,
    } else {
    }
    %c0 = arith.constant 0 : index
    %c0_1 = arith.constant 0 : index
    %3 = vector.load %arg6[%c0, %c0_1] : memref<8x256xf32, #tpu.memory_space<vmem>>, vector<8x256xf32>
    %c0_2 = arith.constant 0 : index
    %c0_3 = arith.constant 0 : index
    %4 = vector.load %arg3[%c0_2, %c0_3] : memref<8x256xf32, #tpu.memory_space<vmem>>, vector<8x256xf32>
    %c0_4 = arith.constant 0 : index
    %c0_5 = arith.constant 0 : index
    %5 = vector.load %arg4[%c0_4, %c0_5] : memref<256x256xf32, #tpu.memory_space<vmem>>, vector<256x256xf32>
    %cst = arith.constant dense<0.000000e+00> : vector<8x256xf32>
    %6 = tpu.matmul %4, %5, %cst {dimension_numbers = #tpu.dot_dimension_numbers<[1], [0], [0], [1], [0, 0, 1, 1], [], []>} : vector<8x256xf32>, vector<256x256xf32>, vector<8x256xf32> -> vector<8x256xf32>
    %7 = arith.addf %3, %6 : vector<8x256xf32>
    %c0_6 = arith.constant 0 : index
    %c0_7 = arith.constant 0 : index
    %8 = vector.load %arg6[%c0_6, %c0_7] : memref<8x256xf32, #tpu.memory_space<vmem>>, vector<8x256xf32>
    tpu.vector_store %arg6[%c0_6, %c0_7], %7 {strides = array<i32>} : memref<8x256xf32, #tpu.memory_space<vmem>>, vector<8x256xf32>,
    %c0_i32_8 = arith.constant 0 : i32
    %9 = arith.cmpi eq, %arg2, %c0_i32_8 : i32
    %10 = arith.extui %9 : i1 to i32
    %c0_i32_9 = arith.constant 0 : i32
    %11 = arith.cmpi ne, %10, %c0_i32_9 : i32
    scf.if %11 {
      %c0_10 = arith.constant 0 : index
      %c0_11 = arith.constant 0 : index
      %12 = vector.load %arg6[%c0_10, %c0_11] : memref<8x256xf32, #tpu.memory_space<vmem>>, vector<8x256xf32>
      %c0_12 = arith.constant 0 : index
      %c0_13 = arith.constant 0 : index
      %13 = vector.load %arg5[%c0_12, %c0_13] : memref<8x256xf32, #tpu.memory_space<vmem>>, vector<8x256xf32>
      tpu.vector_store %arg5[%c0_12, %c0_13], %12 {strides = array<i32>} : memref<8x256xf32, #tpu.memory_space<vmem>>, vector<8x256xf32>,
    } else {
    }
    return
  }
  func.func @transform_0(%arg0: i32, %arg1: i32, %arg2: i32) -> (i32, i32) {
    %c0_i32 = arith.constant 0 : i32
    return %arg0, %arg2 : i32, i32
  }
  func.func @transform_1(%arg0: i32, %arg1: i32, %arg2: i32) -> (i32, i32) {
    %c0_i32 = arith.constant 0 : i32
    return %arg2, %arg1 : i32, i32
  }
  func.func @transform_2(%arg0: i32, %arg1: i32, %arg2: i32) -> (i32, i32) {
    %c0_i32 = arith.constant 0 : i32
    return %arg0, %arg1 : i32, i32
  }
}

</mosaic_0001>

<llo_original>
// kernel: _pallas_matmul.1
$region0: #{_pallas_matmul.1}
  #allocation0 [shape = 'u32[]', space=smem, size = 0x4, offset = 0x4, fixed_abs, tag = 'smem constant byte address 0x4 - core index']
  #allocation1 [shape = 'u32[144,128]{1,0:T(1,128)}', space=vmem, size = 0x12000, scoped, tag = 'internal scratch']
  #allocation2 [shape = 'f32[8,256]{1,0:T(8,128)}', space=vmem, size = 0x2000, scoped, tag = 'scratch operand']
  %s0 = inlined_call_operand.hbm [shape: f32[8,256], index: 0, kind: input, shape index: {}]
  %s1 = inlined_call_operand.hbm [shape: f32[256,256], index: 1, kind: input, shape index: {}]
  %s2 = inlined_call_operand.hbm [shape: f32[8,256], index: 2, kind: output, shape index: {}]
  %s3 = sld [smem:[#allocation0]]
  $region34: #{_pallas_matmul.1} parent=0
    _
  %s5 = ssub.s32 1, %s3
  %s6 = scalar_select 0, %s5, %s3
  $region1: #{_pallas_matmul.1} parent=0
    #allocation3 [shape = 'u8[8192]{0}', space=vmem, size = 0x2000, scoped, tag = 'input window, operand 0, single buffered']
    #allocation4 [shape = 's32[1]{0}', space=sflag, size = 0x4, scoped, tag = 'scoped memory for _pallas_matmul.1']
    #allocation5 [shape = 's32[1]{0}', space=sflag, size = 0x4, scoped, tag = 'scoped memory for _pallas_matmul.1']
    #allocation6 [shape = 'u8[262144]{0}', space=vmem, size = 0x40000, scoped, tag = 'input window, operand 1, single buffered']
    #allocation7 [shape = 's32[1]{0}', space=sflag, size = 0x4, scoped, tag = 'scoped memory for _pallas_matmul.1']
    #allocation8 [shape = 'u8[8192]{0}', space=vmem, size = 0x2000, scoped, tag = 'output window, operand 0, single buffered']
    %7 = vsyncpa [#allocation4], 0
    %8 = vsyncpa [#allocation7], 0
    %9 = vsyncpa [#allocation5], 0
    // Predicated region
    $region2: #{_pallas_matmul.1} parent=1 // pred_check
      _
    $region3: #{_pallas_matmul.1} parent=1 // pred_check_branch
      %11 = sbr.rel (0) target = $region5
    $region4: #{_pallas_matmul.1} parent=1 // pred_region
      %s13 = ssub.s32 256, 256
      %14 = vsyncadd [#allocation4], %s13
      %s16 = sshll.u32 [#allocation3], 4
      %s17 = int_to_ptr.vmem [resolvable:$true] %s16
      %19 = dma.hbm_to_vmem [thread:$0]  %s0, 256, %s17, [#allocation4]
    $region5: #{_pallas_matmul.1} parent=1 // pred_fallthru
      _
    // Predicated region
    $region6: #{_pallas_matmul.1} parent=1 // pred_check
      _
    $region7: #{_pallas_matmul.1} parent=1 // pred_check_branch
      %21 = sbr.rel (0) target = $region9
    $region8: #{_pallas_matmul.1} parent=1 // pred_region
      %s23 = ssub.s32 8192, 8192
      %24 = vsyncadd [#allocation7], %s23
      %s25 = sshll.u32 [#allocation6], 4
      %s26 = int_to_ptr.vmem [resolvable:$true] %s25
      %31 = dma.hbm_to_vmem [thread:$0]  %s1, 8192, %s26, [#allocation7], 256, 256, 16
    $region9: #{_pallas_matmul.1} parent=1 // pred_fallthru
      _
    // Predicated region
    $region10: #{_pallas_matmul.1} parent=1 // pred_check
      _
    $region11: #{_pallas_matmul.1} parent=1 // pred_check_branch
      %33 = sbr.rel (0) target = $region13
    $region12: #{_pallas_matmul.1} parent=1 // pred_region
      %34 = dma.done [#allocation4], 256
    $region13: #{_pallas_matmul.1} parent=1 // pred_fallthru
      _
    // Predicated region
    $region14: #{_pallas_matmul.1} parent=1 // pred_check
      _
    $region15: #{_pallas_matmul.1} parent=1 // pred_check_branch
      %36 = sbr.rel (0) target = $region17
    $region16: #{_pallas_matmul.1} parent=1 // pred_region
      %37 = dma.done [#allocation7], 8192
    $region17: #{_pallas_matmul.1} parent=1 // pred_fallthru
      _
    %p38 = scmp.eq.s32.totalorder 0, 0
    // Predicated region
    $region18: #{_pallas_matmul.1} parent=1 // pred_check
      %p39 = pneg %p38
    $region19: #{_pallas_matmul.1} parent=1 // pred_check_branch
      %41 = sbr.rel (%p39) target = $region21
    $region20: #{_pallas_matmul.1} parent=1 // pred_region
      %42 = vst [vmem:[#allocation2] sm:$0xff] 0.0
      %43 = vst [vmem:[#allocation2 + $0x8] sm:$0xff] 0.0
    $region21: #{_pallas_matmul.1} parent=1 // pred_fallthru
      _
    %v44 = vld [vmem:[#allocation2] sm:$0xff]
    %v45 = vld [vmem:[#allocation2 + $0x8] sm:$0xff]
    %v46 = vld [vmem:[#allocation3] sm:$0xff]
    %v47 = vld [vmem:[#allocation3 + $0x8] sm:$0xff]
    %v48 = vld [vmem:[#allocation6] sm:$0xff]
    %v49 = vld [vmem:[#allocation6 + $0x8] sm:$0xff]
    %v50 = vld [vmem:[#allocation6 + $0x10] sm:$0xff]
    %v51 = vld [vmem:[#allocation6 + $0x18] sm:$0xff]
    %v52 = vld [vmem:[#allocation6 + $0x20] sm:$0xff]
    %v53 = vld [vmem:[#allocation6 + $0x28] sm:$0xff]
    %v54 = vld [vmem:[#allocation6 + $0x30] sm:$0xff]
    %v55 = vld [vmem:[#allocation6 + $0x38] sm:$0xff]
    %v56 = vld [vmem:[#allocation6 + $0x40] sm:$0xff]
    %v57 = vld [vmem:[#allocation6 + $0x48] sm:$0xff]
    %v58 = vld [vmem:[#allocation6 + $0x50] sm:$0xff]
    %v59 = vld [vmem:[#allocation6 + $0x58] sm:$0xff]
    %v60 = vld [vmem:[#allocation6 + $0x60] sm:$0xff]
    %v61 = vld [vmem:[#allocation6 + $0x68] sm:$0xff]
    %v62 = vld [vmem:[#allocation6 + $0x70] sm:$0xff]
    %v63 = vld [vmem:[#allocation6 + $0x78] sm:$0xff]
    %v64 = vld [vmem:[#allocation6 + $0x80] sm:$0xff]
    %v65 = vld [vmem:[#allocation6 + $0x88] sm:$0xff]
    %v66 = vld [vmem:[#allocation6 + $0x90] sm:$0xff]
    %v67 = vld [vmem:[#allocation6 + $0x98] sm:$0xff]
    %v68 = vld [vmem:[#allocation6 + $0xa0] sm:$0xff]
    %v69 = vld [vmem:[#allocation6 + $0xa8] sm:$0xff]
    %v70 = vld [vmem:[#allocation6 + $0xb0] sm:$0xff]
    %v71 = vld [vmem:[#allocation6 + $0xb8] sm:$0xff]
    %v72 = vld [vmem:[#allocation6 + $0xc0] sm:$0xff]
    %v73 = vld [vmem:[#allocation6 + $0xc8] sm:$0xff]
    %v74 = vld [vmem:[#allocation6 + $0xd0] sm:$0xff]
    %v75 = vld [vmem:[#allocation6 + $0xd8] sm:$0xff]
    %v76 = vld [vmem:[#allocation6 + $0xe0] sm:$0xff]
    %v77 = vld [vmem:[#allocation6 + $0xe8] sm:$0xff]
    %v78 = vld [vmem:[#allocation6 + $0xf0] sm:$0xff]
    %v79 = vld [vmem:[#allocation6 + $0xf8] sm:$0xff]
    %v80 = vld [vmem:[#allocation6 + $0x100] sm:$0xff]
    %v81 = vld [vmem:[#allocation6 + $0x108] sm:$0xff]
    %v82 = vld [vmem:[#allocation6 + $0x110] sm:$0xff]
    %v83 = vld [vmem:[#allocation6 + $0x118] sm:$0xff]
    %v84 = vld [vmem:[#allocation6 + $0x120] sm:$0xff]
    %v85 = vld [vmem:[#allocation6 + $0x128] sm:$0xff]
    %v86 = vld [vmem:[#allocation6 + $0x130] sm:$0xff]
    %v87 = vld [vmem:[#allocation6 + $0x138] sm:$0xff]
    %v88 = vld [vmem:[#allocation6 + $0x140] sm:$0xff]
    %v89 = vld [vmem:[#allocation6 + $0x148] sm:$0xff]
    %v90 = vld [vmem:[#allocation6 + $0x150] sm:$0xff]
    %v91 = vld [vmem:[#allocation6 + $0x158] sm:$0xff]
    %v92 = vld [vmem:[#allocation6 + $0x160] sm:$0xff]
    %v93 = vld [vmem:[#allocation6 + $0x168] sm:$0xff]
    %v94 = vld [vmem:[#allocation6 + $0x170] sm:$0xff]
    %v95 = vld [vmem:[#allocation6 + $0x178] sm:$0xff]
    %v96 = vld [vmem:[#allocation6 + $0x180] sm:$0xff]
    %v97 = vld [vmem:[#allocation6 + $0x188] sm:$0xff]
    %v98 = vld [vmem:[#allocation6 + $0x190] sm:$0xff]
    %v99 = vld [vmem:[#allocation6 + $0x198] sm:$0xff]
    %v100 = vld [vmem:[#allocation6 + $0x1a0] sm:$0xff]
    %v101 = vld [vmem:[#allocation6 + $0x1a8] sm:$0xff]
    %v102 = vld [vmem:[#allocation6 + $0x1b0] sm:$0xff]
    %v103 = vld [vmem:[#allocation6 + $0x1b8] sm:$0xff]
    %v104 = vld [vmem:[#allocation6 + $0x1c0] sm:$0xff]
    %v105 = vld [vmem:[#allocation6 + $0x1c8] sm:$0xff]
    %v106 = vld [vmem:[#allocation6 + $0x1d0] sm:$0xff]
    %v107 = vld [vmem:[#allocation6 + $0x1d8] sm:$0xff]
    %v108 = vld [vmem:[#allocation6 + $0x1e0] sm:$0xff]
    %v109 = vld [vmem:[#allocation6 + $0x1e8] sm:$0xff]
    %v110 = vld [vmem:[#allocation6 + $0x1f0] sm:$0xff]
    %v111 = vld [vmem:[#allocation6 + $0x1f8] sm:$0xff]
    %112 = vmatprep.subr.mxu0 %v49
    %113 = vmatpush1.msra.mxu0 %v48
    %114 = vmatprep.subr.mxu0 %v51
    %115 = vmatpush1.msra.mxu0 %v50
    %116 = vmatprep.subr.mxu0 %v53
    %117 = vmatpush1.msra.mxu0 %v52
    %118 = vmatprep.subr.mxu0 %v55
    %119 = vmatpush1.msra.mxu0 %v54
    %120 = vmatprep.subr.mxu0 %v57
    %121 = vmatpush1.msra.mxu0 %v56
    %122 = vmatprep.subr.mxu0 %v59
    %123 = vmatpush1.msra.mxu0 %v58
    %124 = vmatprep.subr.mxu0 %v61
    %125 = vmatpush1.msra.mxu0 %v60
    %126 = vmatprep.subr.mxu0 %v63
    %127 = vmatpush1.msra.mxu0 %v62
    %128 = vmatprep.subr.mxu0 %v65
    %129 = vmatpush1.msra.mxu0 %v64
    %130 = vmatprep.subr.mxu0 %v67
    %131 = vmatpush1.msra.mxu0 %v66
    %132 = vmatprep.subr.mxu0 %v69
    %133 = vmatpush1.msra.mxu0 %v68
    %134 = vmatprep.subr.mxu0 %v71
    %135 = vmatpush1.msra.mxu0 %v70
    %136 = vmatprep.subr.mxu0 %v73
    %137 = vmatpush1.msra.mxu0 %v72
    %138 = vmatprep.subr.mxu0 %v75
    %139 = vmatpush1.msra.mxu0 %v74
    %140 = vmatprep.subr.mxu0 %v77
    %141 = vmatpush1.msra.mxu0 %v76
    %142 = vmatprep.subr.mxu0 %v79
    %143 = vmatpush1.msra.mxu0 %v78
    %144 = vmatprep.subr.mxu0 %v81
    %145 = vmatpush1.msra.mxu0 %v80
    %146 = vmatprep.subr.mxu0 %v83
    %147 = vmatpush1.msra.mxu0 %v82
    %148 = vmatprep.subr.mxu0 %v85
    %149 = vmatpush1.msra.mxu0 %v84
    %150 = vmatprep.subr.mxu0 %v87
    %151 = vmatpush1.msra.mxu0 %v86
    %152 = vmatprep.subr.mxu0 %v89
    %153 = vmatpush1.msra.mxu0 %v88
    %154 = vmatprep.subr.mxu0 %v91
    %155 = vmatpush1.msra.mxu0 %v90
    %156 = vmatprep.subr.mxu0 %v93
    %157 = vmatpush1.msra.mxu0 %v92
    %158 = vmatprep.subr.mxu0 %v95
    %159 = vmatpush1.msra.mxu0 %v94
    %160 = vmatprep.subr.mxu0 %v97
    %161 = vmatpush1.msra.mxu0 %v96
    %162 = vmatprep.subr.mxu0 %v99
    %163 = vmatpush1.msra.mxu0 %v98
    %164 = vmatprep.subr.mxu0 %v101
    %165 = vmatpush1.msra.mxu0 %v100
    %166 = vmatprep.subr.mxu0 %v103
    %167 = vmatpush1.msra.mxu0 %v102
    %168 = vmatprep.subr.mxu0 %v105
    %169 = vmatpush1.msra.mxu0 %v104
    %170 = vmatprep.subr.mxu0 %v107
    %171 = vmatpush1.msra.mxu0 %v106
    %172 = vmatprep.subr.mxu0 %v109
    %173 = vmatpush1.msra.mxu0 %v108
    %174 = vmatprep.subr.mxu0 %v111
    %175 = vmatpush1.msra.mxu0 %v110
    %176 = vmatprep.mubr.f32.mxu0 %v47
    %177 = vmatmul.mubr.f32.gmra.mrb[0].mxu0 %v46
    %v178 = vpop.f32.mrb[0].mxu0
    %v179 = vadd.f32 0.0, %v178
    %v180 = vpop.f32.mrb[0].mxu0
    %v181 = vadd.f32 0.0, %v180
    %182 = vdwg.mxu0
    %v183 = vadd.f32 %v44, %v179
    %v184 = vadd.f32 %v45, %v181
    %185 = vst [vmem:[#allocation2] sm:$0xff] %v183
    %186 = vst [vmem:[#allocation2 + $0x8] sm:$0xff] %v184
    // Predicated region
    $region22: #{_pallas_matmul.1} parent=1 // pred_check
      %p187 = pneg %p38
    $region23: #{_pallas_matmul.1} parent=1 // pred_check_branch
      %189 = sbr.rel (%p187) target = $region25
    $region24: #{_pallas_matmul.1} parent=1 // pred_region
      %v190 = vld [vmem:[#allocation2] sm:$0xff]
      %v191 = vld [vmem:[#allocation2 + $0x8] sm:$0xff]
      %192 = vst [vmem:[#allocation8] sm:$0xff] %v190
      %193 = vst [vmem:[#allocation8 + $0x8] sm:$0xff] %v191
    $region25: #{_pallas_matmul.1} parent=1 // pred_fallthru
      _
    // Predicated region
    $region26: #{_pallas_matmul.1} parent=1 // pred_check
      _
    $region27: #{_pallas_matmul.1} parent=1 // pred_check_branch
      %195 = sbr.rel (0) target = $region29
    $region28: #{_pallas_matmul.1} parent=1 // pred_region
      %s197 = ssub.s32 256, 256
      %198 = vsyncadd [#allocation5], %s197
      %s200 = sshll.u32 [#allocation8], 4
      %s201 = int_to_ptr.vmem [resolvable:$true] %s200
      %203 = dma.vmem_to_hbm [thread:$0]  %s201, 256, %s2, [#allocation5]
    $region29: #{_pallas_matmul.1} parent=1 // pred_fallthru
      _
    // Predicated region
    $region30: #{_pallas_matmul.1} parent=1 // pred_check
      _
    $region31: #{_pallas_matmul.1} parent=1 // pred_check_branch
      %205 = sbr.rel (0) target = $region33
    $region32: #{_pallas_matmul.1} parent=1 // pred_region
      %206 = dma.done [#allocation5], 256
    $region33: #{_pallas_matmul.1} parent=1 // pred_fallthru
      _
    %207 = vsyncpa [#allocation4], 1
    %208 = vsyncpa [#allocation7], 1
    %209 = vsyncpa [#allocation5], 1

</llo_original>
